<compile_context>
chip_gen: v7x
topology: tpu7x:2x2x1
jax: 0.10.0
libtpu: 0.0.40
codegen_flags: <defaults>
</compile_context>

<pallas_src>
import functools

import jax
import jax.numpy as jnp
from jax.experimental import pallas as pl
from jax.experimental.pallas import tpu as pltpu


def _vmem_config():
    """Generation-aware (scoped VMEM limit, per-tile input byte budget)."""
    try:
        phys = pltpu.get_tpu_info().vmem_capacity_bytes
    except Exception:  # pragma: no cover - conservative fallback
        phys = 64 * 1024 * 1024
    if phys >= 128 * 1024 * 1024:
        # v5e / v6e: 128 MiB physical -> be generous, bigger tiles amortize
        # per-step overhead at their lower HBM bandwidth.
        return 80 * 1024 * 1024, 40 * 1024 * 1024
    # v7x (64 MiB physical) or unknown: leave headroom for the f32 upcast
    # intermediates and compiler temporaries.
    return 36 * 1024 * 1024, 14 * 1024 * 1024


def _choose_tile_b(batch, dim, in_itemsize, tile_budget):
    """Largest batch-tile whose true VMEM footprint fits the budget.

    Footprint per row (lane-padded width):
      * 3 inputs x 2 pipeline buffers at the stored itemsize, plus
      * 3 f32 upcast copies and ~2 f32 elementwise temporaries per input.
    """
    lanes = max(128, ((dim + 127) // 128) * 128)     # 128-lane VMEM padding
    per_row = 3 * 2 * lanes * in_itemsize + 9 * lanes * 4
    tile_b = tile_budget // per_row                  # no artificial row cap
    align = 16 if in_itemsize == 2 else 8            # bf16 packs 16 rows/vreg
    if tile_b >= batch:
        return batch                                 # full dim: always legal
    return max(align, (tile_b // align) * align)


def _triplet_loss_kernel(q_ref, p_ref, n_ref, out_ref, *,
                         margin, eps, batch, tile_b, mask_tail):
    # Load (tile_b, D) tiles; always compute in f32 (inputs may be bf16).
    q = q_ref[...].astype(jnp.float32)
    p = p_ref[...].astype(jnp.float32)
    n = n_ref[...].astype(jnp.float32)

    # torch.nn.PairwiseDistance adds eps to the difference before the norm:
    #   d(x, y) = (sum_i |x_i - y_i + eps|^2)^(1/2)
    dp = jnp.sqrt(jnp.sum((q - p + eps) ** 2, axis=-1, keepdims=True))  # (tb,1)
    dn = jnp.sqrt(jnp.sum((q - n + eps) ** 2, axis=-1, keepdims=True))  # (tb,1)

    # hinge: max(d(a,p) - d(a,n) + margin, 0)
    per_sample = jnp.maximum(dp - dn + margin, 0.0)                     # (tb,1)

    if mask_tail:
        # Only emitted when B % tile_b != 0: zero padded tail rows so they
        # contribute nothing to the sum.
        i = pl.program_id(0)
        row = i * tile_b + jax.lax.broadcasted_iota(jnp.int32, (tile_b, 1), 0)
        per_sample = jnp.where(row < batch, per_sample, 0.0)

    # Lane-dense partial-sum row for this tile; final mean happens in JAX.
    tile_sum = jnp.sum(per_sample)
    out_ref[...] = jnp.broadcast_to(tile_sum.reshape(1, 1), (1, 128))


def triplet_loss(query_embedding, positive_embedding, negative_embedding,
                 margin=1.0, eps=1e-6, tile_b=None):
    """Pallas equivalent of TripletLoss.forward. Inputs: (B, D) arrays."""
    B, D = query_embedding.shape
    assert positive_embedding.shape == (B, D)
    assert negative_embedding.shape == (B, D)

    vmem_limit, tile_budget = _vmem_config()
    itemsize = jnp.dtype(query_embedding.dtype).itemsize
    align = 16 if itemsize == 2 else 8

    if tile_b is None:
        tile_b = _choose_tile_b(B, D, itemsize, tile_budget)
    tile_b = min(tile_b, B)

    # Guarantee >= 2 grid steps (when the batch allows aligned sub-tiles) so
    # the "parallel" grid axis can shard across both v7x TensorCores.  Costs
    # one extra ~0.35us step elsewhere; negligible for a mem-bound kernel.
    if tile_b >= B and B >= 2 * align:
        half = pl.cdiv(B, 2)
        tile_b = ((half + align - 1) // align) * align

    num_tiles = pl.cdiv(B, tile_b)
    mask_tail = (B % tile_b) != 0

    kernel = functools.partial(
        _triplet_loss_kernel,
        margin=float(margin), eps=float(eps), batch=B, tile_b=tile_b,
        mask_tail=mask_tail)

    tile_spec = pl.BlockSpec((tile_b, D), lambda i: (i, 0))

    partials = pl.pallas_call(
        kernel,
        out_shape=jax.ShapeDtypeStruct((num_tiles, 128), jnp.float32),
        grid_spec=pltpu.PrefetchScalarGridSpec(
            num_scalar_prefetch=0,
            grid=(num_tiles,),
            in_specs=[tile_spec, tile_spec, tile_spec],
            out_specs=pl.BlockSpec((1, 128), lambda i: (i, 0)),
        ),
        compiler_params=pltpu.CompilerParams(
            dimension_semantics=("parallel",),
            vmem_limit_bytes=vmem_limit),
    )(query_embedding, positive_embedding, negative_embedding)

    # Tiny final reduction over per-tile partial sums; divide by the true B.
    return jnp.sum(partials[:, 0]) / B


def _ref_loss(q, p, n, margin=1.0, eps=1e-6):
    qf, pf, nf = (x.astype(jnp.float32) for x in (q, p, n))
    dp = jnp.sqrt(jnp.sum((qf - pf + eps) ** 2, axis=-1))
    dn = jnp.sqrt(jnp.sum((qf - nf + eps) ** 2, axis=-1))
    return jnp.mean(jnp.maximum(dp - dn + margin, 0.0))


if __name__ == "__main__":
    key = jax.random.PRNGKey(0)
    kq, kp, kn = jax.random.split(key, 3)

    # 1) Small shape consistent with the module (batch=8, hidden=32).
    #    Correctness demo of the kernel, not a benchmark.
    B, D = 8, 32
    q = jax.random.normal(kq, (B, D), dtype=jnp.float32)
    p = jax.random.normal(kp, (B, D), dtype=jnp.float32)
    n = jax.random.normal(kn, (B, D), dtype=jnp.float32)
    loss = triplet_loss(q, p, n, margin=1.0)
    jax.block_until_ready(loss)
    assert jnp.allclose(loss, _ref_loss(q, p, n), atol=1e-5, rtol=1e-5), (
        loss, _ref_loss(q, p, n))

    # 2) Tiled path with a partial tail tile (40 rows, tile=16 -> 16/16/8,
    #    last one masked) and the true-B mean.
    B2, D2 = 40, 32
    q2 = jax.random.normal(kq, (B2, D2), dtype=jnp.float32)
    p2 = jax.random.normal(kp, (B2, D2), dtype=jnp.float32)
    n2 = jax.random.normal(kn, (B2, D2), dtype=jnp.float32)
    loss2 = triplet_loss(q2, p2, n2, margin=1.0, tile_b=16)
    jax.block_until_ready(loss2)
    assert jnp.allclose(loss2, _ref_loss(q2, p2, n2), atol=1e-5, rtol=1e-5), (
        loss2, _ref_loss(q2, p2, n2))

    # 3) Auto tile choice with the >=2-tiles (megacore) split and no tail
    #    masking (64 rows split into 2 x 32 full tiles).
    B3, D3 = 64, 32
    q3 = jax.random.normal(kq, (B3, D3), dtype=jnp.float32)
    p3 = jax.random.normal(kp, (B3, D3), dtype=jnp.float32)
    n3 = jax.random.normal(kn, (B3, D3), dtype=jnp.float32)
    loss3 = triplet_loss(q3, p3, n3, margin=1.0)
    jax.block_until_ready(loss3)
    assert jnp.allclose(loss3, _ref_loss(q3, p3, n3), atol=1e-5, rtol=1e-5), (
        loss3, _ref_loss(q3, p3, n3))

    # 4) bf16 inputs (half the HBM traffic); kernel upcasts to f32 internally.
    qb, pb, nb = (x.astype(jnp.bfloat16) for x in (q2, p2, n2))
    loss4 = triplet_loss(qb, pb, nb, margin=1.0)
    jax.block_until_ready(loss4)
    assert jnp.allclose(loss4, _ref_loss(qb, pb, nb), atol=1e-3, rtol=1e-3), (
        loss4, _ref_loss(qb, pb, nb))

    print("KERNEL_OK")
</pallas_src>

<mosaic_0001>
module attributes {stable_mosaic.version = 11 : i64} {
  func.func @_triplet_loss_kernel(%arg0: i32, %arg1: memref<8x32xf32, #tpu.memory_space<vmem>>, %arg2: memref<8x32xf32, #tpu.memory_space<vmem>>, %arg3: memref<8x32xf32, #tpu.memory_space<vmem>>, %arg4: memref<1x128xf32, #tpu.memory_space<vmem>>) attributes {dimension_semantics = [#tpu.dimension_semantics<parallel>], iteration_bounds = array<i64: 1>, scalar_prefetch = 0 : i64, scratch_operands = 0 : i64, tpu.core_type = #tpu.core_type<tc>, window_params = [{transform_indices = @transform_0, window_bounds = array<i64: 8, 32>}, {transform_indices = @transform_1, window_bounds = array<i64: 8, 32>}, {transform_indices = @transform_2, window_bounds = array<i64: 8, 32>}, {transform_indices = @transform_3, window_bounds = array<i64: 1, 128>}]} {
    %c0 = arith.constant 0 : index
    %c0_0 = arith.constant 0 : index
    %0 = vector.load %arg1[%c0, %c0_0] : memref<8x32xf32, #tpu.memory_space<vmem>>, vector<8x32xf32>
    %c0_1 = arith.constant 0 : index
    %c0_2 = arith.constant 0 : index
    %1 = vector.load %arg2[%c0_1, %c0_2] : memref<8x32xf32, #tpu.memory_space<vmem>>, vector<8x32xf32>
    %c0_3 = arith.constant 0 : index
    %c0_4 = arith.constant 0 : index
    %2 = vector.load %arg3[%c0_3, %c0_4] : memref<8x32xf32, #tpu.memory_space<vmem>>, vector<8x32xf32>
    %3 = arith.subf %0, %1 : vector<8x32xf32>
    %cst = arith.constant 9.99999997E-7 : f32
    %4 = vector.broadcast %cst : f32 to vector<8x32xf32>
    %5 = arith.addf %3, %4 : vector<8x32xf32>
    %6 = arith.mulf %5, %5 : vector<8x32xf32>
    %cst_5 = arith.constant dense<0.000000e+00> : vector<8xf32>
    %7 = vector.multi_reduction <add>, %6, %cst_5 [1] : vector<8x32xf32> to vector<8xf32>
    %8 = vector.shape_cast %7 : vector<8xf32> to vector<8x1xf32>
    %9 = math.sqrt %8 : vector<8x1xf32>
    %10 = arith.subf %0, %2 : vector<8x32xf32>
    %cst_6 = arith.constant 9.99999997E-7 : f32
    %11 = vector.broadcast %cst_6 : f32 to vector<8x32xf32>
    %12 = arith.addf %10, %11 : vector<8x32xf32>
    %13 = arith.mulf %12, %12 : vector<8x32xf32>
    %cst_7 = arith.constant dense<0.000000e+00> : vector<8xf32>
    %14 = vector.multi_reduction <add>, %13, %cst_7 [1] : vector<8x32xf32> to vector<8xf32>
    %15 = vector.shape_cast %14 : vector<8xf32> to vector<8x1xf32>
    %16 = math.sqrt %15 : vector<8x1xf32>
    %17 = arith.subf %9, %16 : vector<8x1xf32>
    %cst_8 = arith.constant 1.000000e+00 : f32
    %18 = vector.broadcast %cst_8 : f32 to vector<8x1xf32>
    %19 = arith.addf %17, %18 : vector<8x1xf32>
    %cst_9 = arith.constant 0.000000e+00 : f32
    %20 = vector.broadcast %cst_9 : f32 to vector<8x1xf32>
    %21 = arith.maximumf %19, %20 : vector<8x1xf32>
    %22 = vector.shape_cast %21 : vector<8x1xf32> to vector<1x8x1xf32>
    %cst_10 = arith.constant dense<0.000000e+00> : vector<1xf32>
    %23 = vector.multi_reduction <add>, %22, %cst_10 [1, 2] : vector<1x8x1xf32> to vector<1xf32>
    %24 = vector.shape_cast %23 : vector<1xf32> to vector<1x1x1xf32>
    %25 = vector.extract %24[0, 0, 0] : f32 from vector<1x1x1xf32>
    %26 = vector.broadcast %25 : f32 to vector<1x1xf32>
    %27 = vector.shape_cast %26 : vector<1x1xf32> to vector<1x1xf32>
    %28 = vector.broadcast %27 : vector<1x1xf32> to vector<1x128xf32>
    %c0_11 = arith.constant 0 : index
    %c0_12 = arith.constant 0 : index
    %29 = vector.load %arg4[%c0_11, %c0_12] : memref<1x128xf32, #tpu.memory_space<vmem>>, vector<1x128xf32>
    tpu.vector_store %arg4[%c0_11, %c0_12], %28 {strides = array<i32>} : memref<1x128xf32, #tpu.memory_space<vmem>>, vector<1x128xf32>,
    return
  }
  func.func @transform_0(%arg0: i32) -> (i32, i32) {
    %c0_i32 = arith.constant 0 : i32
    %c0_i32_0 = arith.constant 0 : i32
    return %arg0, %c0_i32 : i32, i32
  }
  func.func @transform_1(%arg0: i32) -> (i32, i32) {
    %c0_i32 = arith.constant 0 : i32
    %c0_i32_0 = arith.constant 0 : i32
    return %arg0, %c0_i32 : i32, i32
  }
  func.func @transform_2(%arg0: i32) -> (i32, i32) {
    %c0_i32 = arith.constant 0 : i32
    %c0_i32_0 = arith.constant 0 : i32
    return %arg0, %c0_i32 : i32, i32
  }
  func.func @transform_3(%arg0: i32) -> (i32, i32) {
    %c0_i32 = arith.constant 0 : i32
    %c0_i32_0 = arith.constant 0 : i32
    return %arg0, %c0_i32 : i32, i32
  }
}

</mosaic_0001>

<llo_original>
// kernel: tpu_custom_call.1
$region0: #{tpu_custom_call.1}
  #allocation0 [shape = 'u32[]', space=smem, size = 0x4, offset = 0x4, fixed_abs, tag = 'smem constant byte address 0x4 - core index']
  #allocation1 [shape = 'u32[144,128]{1,0:T(1,128)}', space=vmem, size = 0x12000, scoped, tag = 'internal scratch']
  %s0 = inlined_call_operand.hbm [shape: f32[8,32], index: 0, kind: input, shape index: {}]
  %s1 = inlined_call_operand.hbm [shape: f32[8,32], index: 1, kind: input, shape index: {}]
  %s2 = inlined_call_operand.hbm [shape: f32[8,32], index: 2, kind: input, shape index: {}]
  %s3 = inlined_call_operand.hbm [shape: f32[1,128], index: 3, kind: output, shape index: {}]
  %s4 = sld [smem:[#allocation0]]
  $region34: #{tpu_custom_call.1} parent=0
    _
  %s6 = ssub.s32 1, %s4
  %s7 = scalar_select 0, %s6, %s4
  $region1: #{tpu_custom_call.1} parent=0
    #allocation2 [shape = 'u8[4096]{0}', space=vmem, size = 0x1000, scoped, tag = 'input window, operand 0, single buffered']
    #allocation3 [shape = 's32[1]{0}', space=sflag, size = 0x4, scoped, tag = 'scoped memory for tpu_custom_call.1']
    #allocation4 [shape = 's32[1]{0}', space=sflag, size = 0x4, scoped, tag = 'scoped memory for tpu_custom_call.1']
    #allocation5 [shape = 'u8[4096]{0}', space=vmem, size = 0x1000, scoped, tag = 'input window, operand 1, single buffered']
    #allocation6 [shape = 's32[1]{0}', space=sflag, size = 0x4, scoped, tag = 'scoped memory for tpu_custom_call.1']
    #allocation7 [shape = 'u8[4096]{0}', space=vmem, size = 0x1000, scoped, tag = 'input window, operand 2, single buffered']
    #allocation8 [shape = 'u8[512]{0}', space=vmem, size = 0x400, scoped, tag = 'output window, operand 0, single buffered']
    %8 = vsyncpa [#allocation3], 0
    %9 = vsyncpa [#allocation6], 0
    %10 = vsyncpa [#allocation4], 0
    // Predicated region
    $region2: #{tpu_custom_call.1} parent=1 // pred_check
      _
    $region3: #{tpu_custom_call.1} parent=1 // pred_check_branch
      %12 = sbr.rel (0) target = $region5
    $region4: #{tpu_custom_call.1} parent=1 // pred_region
      %s14 = ssub.s32 128, 128
      %15 = vsyncadd [#allocation3], %s14
      %s17 = sshll.u32 [#allocation2], 4
      %s18 = int_to_ptr.vmem [resolvable:$true] %s17
      %20 = dma.hbm_to_vmem [thread:$0]  %s0, 128, %s18, [#allocation3]
    $region5: #{tpu_custom_call.1} parent=1 // pred_fallthru
      _
    // Predicated region
    $region6: #{tpu_custom_call.1} parent=1 // pred_check
      _
    $region7: #{tpu_custom_call.1} parent=1 // pred_check_branch
      %22 = sbr.rel (0) target = $region9
    $region8: #{tpu_custom_call.1} parent=1 // pred_region
      %s24 = ssub.s32 128, 128
      %25 = vsyncadd [#allocation6], %s24
      %s27 = sshll.u32 [#allocation5], 4
      %s28 = int_to_ptr.vmem [resolvable:$true] %s27
      %30 = dma.hbm_to_vmem [thread:$0]  %s1, 128, %s28, [#allocation6]
    $region9: #{tpu_custom_call.1} parent=1 // pred_fallthru
      _
    // Predicated region
    $region10: #{tpu_custom_call.1} parent=1 // pred_check
      _
    $region11: #{tpu_custom_call.1} parent=1 // pred_check_branch
      %32 = sbr.rel (0) target = $region13
    $region12: #{tpu_custom_call.1} parent=1 // pred_region
      %s34 = ssub.s32 128, 128
      %35 = vsyncadd [#allocation6], %s34
      %s37 = sshll.u32 [#allocation7], 4
      %s38 = int_to_ptr.vmem [resolvable:$true] %s37
      %40 = dma.hbm_to_vmem [thread:$0]  %s2, 128, %s38, [#allocation6]
    $region13: #{tpu_custom_call.1} parent=1 // pred_fallthru
      _
    // Predicated region
    $region14: #{tpu_custom_call.1} parent=1 // pred_check
      _
    $region15: #{tpu_custom_call.1} parent=1 // pred_check_branch
      %42 = sbr.rel (0) target = $region17
    $region16: #{tpu_custom_call.1} parent=1 // pred_region
      %43 = dma.done [#allocation3], 128
    $region17: #{tpu_custom_call.1} parent=1 // pred_fallthru
      _
    // Predicated region
    $region18: #{tpu_custom_call.1} parent=1 // pred_check
      _
    $region19: #{tpu_custom_call.1} parent=1 // pred_check_branch
      %45 = sbr.rel (0) target = $region21
    $region20: #{tpu_custom_call.1} parent=1 // pred_region
      %46 = dma.done [#allocation6], 128
    $region21: #{tpu_custom_call.1} parent=1 // pred_fallthru
      _
    // Predicated region
    $region22: #{tpu_custom_call.1} parent=1 // pred_check
      _
    $region23: #{tpu_custom_call.1} parent=1 // pred_check_branch
      %48 = sbr.rel (0) target = $region25
    $region24: #{tpu_custom_call.1} parent=1 // pred_region
      %49 = dma.done [#allocation6], 128
    $region25: #{tpu_custom_call.1} parent=1 // pred_fallthru
      _
    %v50 = vld [vmem:[#allocation2] sm:$0xff]
    %v51 = vld [vmem:[#allocation5] sm:$0xff]
    %v52 = vld [vmem:[#allocation7] sm:$0xff]
    %v53 = vsub.f32 %v50, %v51
    %v54 = vadd.f32 %v53, 1e-06
    %v55 = vmul.f32 %v54, %v54
    %vm56 = vcmask 261120
    %v57 = vsel %vm56, %v55, 0.0
    %58 = vadd.xlane.f32.xlu0 %v57
    %v59 = vpop.xlane.xlu0 %58
    %v60 = vrsqrt.pop %v59
    %v61 = vmul.f32 %v59, %v60
    %vm62 = vcmp.eq.f32.partialorder %v59, inf
    %v63 = vsel %vm62, %v59, %v61
    %vm64 = vcmp.eq.f32.partialorder %v59, 0.0
    %v65 = vand.u32 %v59, 2147483648
    %v66 = vsel %vm64, %v65, %v63
    %v67 = vsub.f32 %v50, %v52
    %v68 = vadd.f32 %v67, 1e-06
    %v69 = vmul.f32 %v68, %v68
    %v70 = vsel %vm56, %v69, 0.0
    %71 = vadd.xlane.f32.xlu0 %v70
    %v72 = vpop.xlane.xlu0 %71
    %v73 = vrsqrt.pop %v72
    %v74 = vmul.f32 %v72, %v73
    %vm75 = vcmp.eq.f32.partialorder %v72, inf
    %v76 = vsel %vm75, %v72, %v74
    %vm77 = vcmp.eq.f32.partialorder %v72, 0.0
    %v78 = vand.u32 %v72, 2147483648
    %v79 = vsel %vm77, %v78, %v76
    %v80 = vsub.f32 %v66, %v79
    %v81 = vadd.f32 %v80, 1.0
    %v82 = vmax.f32 %v81, 0.0
    %vm83 = vcmask 7168
    %v84 = vsel %vm83, %v82, 0.0
    %85 = vadd.xlane.f32.xlu0 %v84
    %v86 = vpop.xlane.xlu0 %85
    %v87 = vrot.slane %v86, 4
    %v88 = vadd.f32 %v86, %v87
    %v89 = vrot.slane %v88, 2
    %v90 = vadd.f32 %v88, %v89
    %v91 = vrot.slane %v90, 1
    %v92 = vadd.f32 %v90, %v91
    %s93 = vtos %v92
    %v94 = vstv %s93
    %95 = vst [vmem:[#allocation8] sm:$0x1] %v94
    // Predicated region
    $region26: #{tpu_custom_call.1} parent=1 // pred_check
      _
    $region27: #{tpu_custom_call.1} parent=1 // pred_check_branch
      %97 = sbr.rel (0) target = $region29
    $region28: #{tpu_custom_call.1} parent=1 // pred_region
      %s99 = ssub.s32 16, 16
      %100 = vsyncadd [#allocation4], %s99
      %s102 = sshll.u32 [#allocation8], 4
      %s103 = int_to_ptr.vmem [resolvable:$true] %s102
      %105 = dma.vmem_to_hbm [thread:$0]  %s103, 16, %s3, [#allocation4]
    $region29: #{tpu_custom_call.1} parent=1 // pred_fallthru
      _
    // Predicated region
    $region30: #{tpu_custom_call.1} parent=1 // pred_check
      _
    $region31: #{tpu_custom_call.1} parent=1 // pred_check_branch
      %107 = sbr.rel (0) target = $region33
    $region32: #{tpu_custom_call.1} parent=1 // pred_region
      %108 = dma.done [#allocation4], 16
    $region33: #{tpu_custom_call.1} parent=1 // pred_fallthru
      _
    %109 = vsyncpa [#allocation3], 1
    %110 = vsyncpa [#allocation6], 1
    %111 = vsyncpa [#allocation4], 1

</llo_original>
